<compile_context>
chip_gen: v7x
topology: tpu7x:2x2x1
jax: 0.10.0
libtpu: 0.0.40
codegen_flags: <defaults>
</compile_context>

<pallas_src>
import jax
import jax.numpy as jnp
from jax.experimental import pallas as pl
from jax.experimental.pallas import tpu as pltpu


def _conv_stats_kernel(w_ref, p_ref, conv_ref, sum_ref, ssq_ref):
    """One conv lane-tile + its partial BN statistics.

    w_ref:    (C_out, K_pad)    bf16   (K_pad = pad(KH*KW*C_in, 16))
    p_ref:    (K_pad, TP)       bf16   im2col patches for this lane tile
    conv_ref: (C_out, TP)       bf16   conv output tile (stats use f32 acc)
    sum_ref:  (1, C_out, 1)     f32    partial sum over this tile
    ssq_ref:  (1, C_out, 1)     f32    partial sum of squares over this tile
    """
    acc = jnp.dot(w_ref[...], p_ref[...],
                  preferred_element_type=jnp.float32)       # (C_out, TP) f32
    conv_ref[...] = acc.astype(conv_ref.dtype)
    sum_ref[0] = jnp.sum(acc, axis=1, keepdims=True)
    ssq_ref[0] = jnp.sum(acc * acc, axis=1, keepdims=True)


def _bn_apply_kernel(conv_ref, scale_ref, shift_ref, o_ref):
    """Pure scale+shift over a lane-dense tile (stats already reduced globally).

    conv_ref:  (C_out, THW)     bf16
    scale_ref: (C_out, 1)       f32
    shift_ref: (C_out, 1)       f32
    o_ref:     (1, C_out, THW)  f32
    """
    o_ref[0] = (conv_ref[...].astype(jnp.float32) * scale_ref[...]
                + shift_ref[...])


def _pick_tile(total, prefer=(8192, 4096, 2048, 1024, 512, 256, 128)):
    """Largest preferred lane tile that divides `total` (full extent fallback)."""
    for cand in prefer:
        if cand <= total and total % cand == 0:
            return cand
    return total  # ragged/tiny: single full-extent block (legal, maybe masked)


def conv_bn(x_nchw, weight_oihw, gamma, beta, *, padding=1, eps=1e-5):
    """Equivalent of Conv(in_c, out_c, kernel_size=K, padding=padding)(x)."""
    N, C_in, H, W = x_nchw.shape
    C_out, _, KH, KW = weight_oihw.shape
    H_out = H + 2 * padding - KH + 1
    W_out = W + 2 * padding - KW + 1
    HW = H_out * W_out
    P = N * HW                       # batch folded into the lane (pixel) axis
    K = KH * KW * C_in
    K_pad = ((K + 15) // 16) * 16    # bf16 sublane packing (36 -> 48)

    # ---- wrapper-side im2col, built in bf16, K-major layout (K_pad, P) ----
    xb = x_nchw.astype(jnp.bfloat16)
    x_pad = jnp.pad(xb, ((0, 0), (0, 0), (padding, padding), (padding, padding)))
    x_pad = jnp.transpose(x_pad, (1, 0, 2, 3))           # (C_in, N, Hp, Wp) - tiny
    cols = [x_pad[:, :, kh:kh + H_out, kw:kw + W_out]    # each (C_in, N, Ho, Wo)
            for kh in range(KH) for kw in range(KW)]
    patches = jnp.stack(cols, axis=0)                    # (KH*KW, C_in, N, Ho, Wo)
    patches = patches.reshape(K, P)
    patches = jnp.pad(patches, ((0, K_pad - K), (0, 0))) # zero-pad contraction

    # weight OIHW -> (C_out, KH*KW*C_in) matching the (kh, kw, c_in) ordering.
    w = jnp.transpose(weight_oihw, (0, 2, 3, 1)).reshape(C_out, K)
    w = jnp.pad(w, ((0, 0), (0, K_pad - K))).astype(jnp.bfloat16)

    gamma2 = gamma.reshape(C_out, 1).astype(jnp.float32)
    beta2 = beta.reshape(C_out, 1).astype(jnp.float32)

    # ---- pass 1: conv matmul over large lane tiles + per-tile BN partials ----
    TP = _pick_tile(P)
    T1 = P // TP
    conv_bf16, part_sum, part_ssq = pl.pallas_call(
        _conv_stats_kernel,
        grid=(T1,),
        in_specs=[
            pl.BlockSpec((C_out, K_pad), lambda t: (0, 0)),
            pl.BlockSpec((K_pad, TP), lambda t: (0, t)),
        ],
        out_specs=(
            pl.BlockSpec((C_out, TP), lambda t: (0, t)),
            pl.BlockSpec((1, C_out, 1), lambda t: (t, 0, 0)),
            pl.BlockSpec((1, C_out, 1), lambda t: (t, 0, 0)),
        ),
        out_shape=(
            jax.ShapeDtypeStruct((C_out, P), jnp.bfloat16),
            jax.ShapeDtypeStruct((T1, C_out, 1), jnp.float32),
            jax.ShapeDtypeStruct((T1, C_out, 1), jnp.float32),
        ),
        compiler_params=pltpu.CompilerParams(
            dimension_semantics=("parallel",)),
    )(w, patches)

    # ---- global stats reduce (tiny, once) -> precomputed scale / shift ----
    inv_count = 1.0 / float(P)
    s = jnp.sum(part_sum, axis=0)                        # (C_out, 1)
    ss = jnp.sum(part_ssq, axis=0)                       # (C_out, 1)
    mean = s * inv_count
    var = ss * inv_count - mean * mean                   # biased var (training BN)
    inv_std = jax.lax.rsqrt(var + float(eps))
    scale = gamma2 * inv_std                             # (C_out, 1)
    shift = beta2 - mean * scale

    # ---- pass 2: lane-dense scale+shift, written straight into (N, C_out, HW)
    THW = _pick_tile(HW)
    T2 = HW // THW
    out = pl.pallas_call(
        _bn_apply_kernel,
        grid=(N, T2),
        in_specs=[
            pl.BlockSpec((C_out, THW), lambda n, t: (0, n * T2 + t)),
            pl.BlockSpec((C_out, 1), lambda n, t: (0, 0)),
            pl.BlockSpec((C_out, 1), lambda n, t: (0, 0)),
        ],
        out_specs=pl.BlockSpec((1, C_out, THW), lambda n, t: (n, 0, t)),
        out_shape=jax.ShapeDtypeStruct((N, C_out, HW), jnp.float32),
        compiler_params=pltpu.CompilerParams(
            dimension_semantics=("parallel", "parallel")),
    )(conv_bf16, scale, shift)

    # (N, C_out, H*W) -> NCHW is a pure reshape (no relayout).
    return out.reshape(N, C_out, H_out, W_out)


def _reference(x_nchw, weight_oihw, gamma, beta, *, padding=1, eps=1e-5):
    conv = jax.lax.conv_general_dilated(
        x_nchw.astype(jnp.float32), weight_oihw.astype(jnp.float32),
        window_strides=(1, 1), padding=[(padding, padding), (padding, padding)],
        dimension_numbers=("NCHW", "OIHW", "NCHW"))
    mean = jnp.mean(conv, axis=(0, 2, 3), keepdims=True)
    var = jnp.mean((conv - mean) ** 2, axis=(0, 2, 3), keepdims=True)
    g = gamma.reshape(1, -1, 1, 1)
    b = beta.reshape(1, -1, 1, 1)
    return (conv - mean) * jax.lax.rsqrt(var + eps) * g + b


if __name__ == "__main__":
    # Module config: Conv(in_c=4, out_c=8, kernel_size=3, padding=1)
    N, C_in, C_out, H, W, K, PAD = 2, 4, 8, 16, 16, 3, 1

    key = jax.random.PRNGKey(0)
    kx, kw = jax.random.split(key)
    x = jax.random.normal(kx, (N, C_in, H, W), dtype=jnp.float32)
    # Deterministic Conv2d weight (Kaiming-ish scale), PyTorch OIHW layout.
    fan_in = C_in * K * K
    weight = jax.random.normal(kw, (C_out, C_in, K, K), dtype=jnp.float32)
    weight = weight * (1.0 / jnp.sqrt(fan_in))
    # BatchNorm2d default init (training-mode forward): gamma=1, beta=0, eps=1e-5.
    gamma = jnp.ones((C_out,), jnp.float32)
    beta = jnp.zeros((C_out,), jnp.float32)

    out = conv_bn(x, weight, gamma, beta, padding=PAD)
    out = jax.block_until_ready(out)

    ref = _reference(x, weight, gamma, beta, padding=PAD)
    assert out.shape == (N, C_out, H, W), out.shape
    assert jnp.allclose(out, ref, rtol=5e-2, atol=5e-2), \
        float(jnp.max(jnp.abs(out - ref)))

    print("KERNEL_OK")
</pallas_src>

<mosaic_0001>
module attributes {stable_mosaic.version = 11 : i64} {
  func.func @_conv_stats_kernel(%arg0: i32, %arg1: memref<8x48xbf16, #tpu.memory_space<vmem>>, %arg2: memref<48x512xbf16, #tpu.memory_space<vmem>>, %arg3: memref<8x512xbf16, #tpu.memory_space<vmem>>, %arg4: memref<1x8x1xf32, #tpu.memory_space<vmem>>, %arg5: memref<1x8x1xf32, #tpu.memory_space<vmem>>) attributes {dimension_semantics = [#tpu.dimension_semantics<parallel>], iteration_bounds = array<i64: 1>, scalar_prefetch = 0 : i64, scratch_operands = 0 : i64, tpu.core_type = #tpu.core_type<tc>, window_params = [{pipeline_mode = #tpu.pipeline_mode<synchronous>, transform_indices = @transform_0, window_bounds = array<i64: 8, 48>}, {transform_indices = @transform_1, window_bounds = array<i64: 48, 512>}, {transform_indices = @transform_2, window_bounds = array<i64: 8, 512>}, {transform_indices = @transform_3, window_bounds = array<i64: 1, 8, 1>}, {transform_indices = @transform_4, window_bounds = array<i64: 1, 8, 1>}]} {
    %c0 = arith.constant 0 : index
    %c0_0 = arith.constant 0 : index
    %0 = vector.load %arg1[%c0, %c0_0] : memref<8x48xbf16, #tpu.memory_space<vmem>>, vector<8x48xbf16>
    %c0_1 = arith.constant 0 : index
    %c0_2 = arith.constant 0 : index
    %1 = vector.load %arg2[%c0_1, %c0_2] : memref<48x512xbf16, #tpu.memory_space<vmem>>, vector<48x512xbf16>
    %cst = arith.constant dense<0.000000e+00> : vector<8x512xf32>
    %2 = tpu.matmul %0, %1, %cst {dimension_numbers = #tpu.dot_dimension_numbers<[1], [0], [0], [1], [0, 0, 1, 1], [], []>} : vector<8x48xbf16>, vector<48x512xbf16>, vector<8x512xf32> -> vector<8x512xf32>
    %3 = arith.truncf %2 : vector<8x512xf32> to vector<8x512xbf16>
    %c0_3 = arith.constant 0 : index
    %c0_4 = arith.constant 0 : index
    %4 = vector.load %arg3[%c0_3, %c0_4] : memref<8x512xbf16, #tpu.memory_space<vmem>>, vector<8x512xbf16>
    tpu.vector_store %arg3[%c0_3, %c0_4], %3 {strides = array<i32>} : memref<8x512xbf16, #tpu.memory_space<vmem>>, vector<8x512xbf16>,
    %cst_5 = arith.constant dense<0.000000e+00> : vector<8xf32>
    %5 = vector.multi_reduction <add>, %2, %cst_5 [1] : vector<8x512xf32> to vector<8xf32>
    %6 = vector.shape_cast %5 : vector<8xf32> to vector<8x1xf32>
    %c0_6 = arith.constant 0 : index
    %c0_7 = arith.constant 0 : index
    %c0_8 = arith.constant 0 : index
    %7 = vector.load %arg4[%c0_6, %c0_7, %c0_8] : memref<1x8x1xf32, #tpu.memory_space<vmem>>, vector<1x8x1xf32>
    %8 = vector.shape_cast %7 : vector<1x8x1xf32> to vector<8x1xf32>
    %9 = vector.shape_cast %6 : vector<8x1xf32> to vector<1x8x1xf32>
    tpu.vector_store %arg4[%c0_6, %c0_7, %c0_8], %9 {strides = array<i32>} : memref<1x8x1xf32, #tpu.memory_space<vmem>>, vector<1x8x1xf32>,
    %10 = arith.mulf %2, %2 : vector<8x512xf32>
    %cst_9 = arith.constant dense<0.000000e+00> : vector<8xf32>
    %11 = vector.multi_reduction <add>, %10, %cst_9 [1] : vector<8x512xf32> to vector<8xf32>
    %12 = vector.shape_cast %11 : vector<8xf32> to vector<8x1xf32>
    %c0_10 = arith.constant 0 : index
    %c0_11 = arith.constant 0 : index
    %c0_12 = arith.constant 0 : index
    %13 = vector.load %arg5[%c0_10, %c0_11, %c0_12] : memref<1x8x1xf32, #tpu.memory_space<vmem>>, vector<1x8x1xf32>
    %14 = vector.shape_cast %13 : vector<1x8x1xf32> to vector<8x1xf32>
    %15 = vector.shape_cast %12 : vector<8x1xf32> to vector<1x8x1xf32>
    tpu.vector_store %arg5[%c0_10, %c0_11, %c0_12], %15 {strides = array<i32>} : memref<1x8x1xf32, #tpu.memory_space<vmem>>, vector<1x8x1xf32>,
    return
  }
  func.func @transform_0(%arg0: i32) -> (i32, i32) {
    %c0_i32 = arith.constant 0 : i32
    %c0_i32_0 = arith.constant 0 : i32
    %c0_i32_1 = arith.constant 0 : i32
    return %c0_i32, %c0_i32_0 : i32, i32
  }
  func.func @transform_1(%arg0: i32) -> (i32, i32) {
    %c0_i32 = arith.constant 0 : i32
    %c0_i32_0 = arith.constant 0 : i32
    return %c0_i32, %arg0 : i32, i32
  }
  func.func @transform_2(%arg0: i32) -> (i32, i32) {
    %c0_i32 = arith.constant 0 : i32
    %c0_i32_0 = arith.constant 0 : i32
    return %c0_i32, %arg0 : i32, i32
  }
  func.func @transform_3(%arg0: i32) -> (i32, i32, i32) {
    %c0_i32 = arith.constant 0 : i32
    %c0_i32_0 = arith.constant 0 : i32
    %c0_i32_1 = arith.constant 0 : i32
    return %arg0, %c0_i32, %c0_i32_0 : i32, i32, i32
  }
  func.func @transform_4(%arg0: i32) -> (i32, i32, i32) {
    %c0_i32 = arith.constant 0 : i32
    %c0_i32_0 = arith.constant 0 : i32
    %c0_i32_1 = arith.constant 0 : i32
    return %arg0, %c0_i32, %c0_i32_0 : i32, i32, i32
  }
}

</mosaic_0001>

<llo_original>
// kernel: tpu_custom_call.1
$region0: #{tpu_custom_call.1}
  #allocation0 [shape = 'u32[]', space=smem, size = 0x4, offset = 0x4, fixed_abs, tag = 'smem constant byte address 0x4 - core index']
  #allocation1 [shape = 'u32[144,128]{1,0:T(1,128)}', space=vmem, size = 0x12000, scoped, tag = 'internal scratch']
  %s0 = inlined_call_operand.hbm [shape: bf16[8,48], index: 0, kind: input, shape index: {}]
  %s1 = inlined_call_operand.hbm [shape: bf16[48,512], index: 1, kind: input, shape index: {}]
  %s2 = inlined_call_operand.hbm [shape: bf16[8,512], index: 2, kind: output, shape index: {0}]
  %s3 = inlined_call_operand.vmem [shape: f32[1,8,1], index: 3, kind: output, shape index: {1}]
  %s4 = inlined_call_operand.vmem [shape: f32[1,8,1], index: 4, kind: output, shape index: {2}]
  %5 = xla_tuple %s2, %s3, %s4
  %s6 = sld [smem:[#allocation0]]
  $region42: #{tpu_custom_call.1} parent=0
    _
  %s8 = ssub.s32 1, %s6
  %s9 = scalar_select 0, %s8, %s6
  $region1: #{tpu_custom_call.1} parent=0
    #allocation2 [shape = 'u8[2048]{0}', space=vmem, size = 0x800, scoped, tag = 'input window, operand 0, single buffered']
    #allocation3 [shape = 's32[1]{0}', space=sflag, size = 0x4, scoped, tag = 'scoped memory for tpu_custom_call.1']
    #allocation4 [shape = 's32[1]{0}', space=sflag, size = 0x4, scoped, tag = 'scoped memory for tpu_custom_call.1']
    #allocation5 [shape = 'u8[49152]{0}', space=vmem, size = 0xc000, scoped, tag = 'input window, operand 1, single buffered']
    #allocation6 [shape = 's32[1]{0}', space=sflag, size = 0x4, scoped, tag = 'scoped memory for tpu_custom_call.1']
    #allocation7 [shape = 'u8[8192]{0}', space=vmem, size = 0x2000, scoped, tag = 'output window, operand 0, single buffered']
    %10 = vsyncpa [#allocation3], 0
    %11 = vsyncpa [#allocation6], 0
    %12 = vsyncpa [#allocation4], 0
    // Predicated region
    $region2: #{tpu_custom_call.1} parent=1 // pred_check
      _
    $region3: #{tpu_custom_call.1} parent=1 // pred_check_branch
      %14 = sbr.rel (0) target = $region5
    $region4: #{tpu_custom_call.1} parent=1 // pred_region
      %s16 = ssub.s32 64, 64
      %17 = vsyncadd [#allocation3], %s16
      %s19 = sshll.u32 [#allocation2], 4
      %s20 = int_to_ptr.vmem [resolvable:$true] %s19
      %22 = dma.hbm_to_vmem [thread:$0]  %s0, 64, %s20, [#allocation3]
    $region5: #{tpu_custom_call.1} parent=1 // pred_fallthru
      _
    // Predicated region
    $region6: #{tpu_custom_call.1} parent=1 // pred_check
      _
    $region7: #{tpu_custom_call.1} parent=1 // pred_check_branch
      %24 = sbr.rel (0) target = $region9
    $region8: #{tpu_custom_call.1} parent=1 // pred_region
      %s26 = ssub.s32 1536, 1536
      %27 = vsyncadd [#allocation6], %s26
      %s28 = sshll.u32 [#allocation5], 4
      %s29 = int_to_ptr.vmem [resolvable:$true] %s28
      %34 = dma.hbm_to_vmem [thread:$0]  %s1, 1536, %s29, [#allocation6], 256, 256, 16
    $region9: #{tpu_custom_call.1} parent=1 // pred_fallthru
      _
    // Predicated region
    $region10: #{tpu_custom_call.1} parent=1 // pred_check
      _
    $region11: #{tpu_custom_call.1} parent=1 // pred_check_branch
      %36 = sbr.rel (0) target = $region13
    $region12: #{tpu_custom_call.1} parent=1 // pred_region
      %37 = dma.done [#allocation3], 64
    $region13: #{tpu_custom_call.1} parent=1 // pred_fallthru
      _
    // Predicated region
    $region14: #{tpu_custom_call.1} parent=1 // pred_check
      _
    $region15: #{tpu_custom_call.1} parent=1 // pred_check_branch
      %39 = sbr.rel (0) target = $region17
    $region16: #{tpu_custom_call.1} parent=1 // pred_region
      %40 = dma.done [#allocation6], 1536
    $region17: #{tpu_custom_call.1} parent=1 // pred_fallthru
      _
    %v42 = vld [vmem:[#allocation2] sm:$0xf]
    %v43 = vld [vmem:[#allocation5] sm:$0xff]
    %v44 = vld [vmem:[#allocation5 + $0x8] sm:$0xff]
    %v45 = vld [vmem:[#allocation5 + $0x10] sm:$0xff]
    %v46 = vld [vmem:[#allocation5 + $0x18] sm:$0xff]
    %v47 = vld [vmem:[#allocation5 + $0x20] sm:$0xff]
    %v48 = vld [vmem:[#allocation5 + $0x28] sm:$0xff]
    %v49 = vld [vmem:[#allocation5 + $0x30] sm:$0xff]
    %v50 = vld [vmem:[#allocation5 + $0x38] sm:$0xff]
    %v51 = vld [vmem:[#allocation5 + $0x40] sm:$0xff]
    %v52 = vld [vmem:[#allocation5 + $0x48] sm:$0xff]
    %v53 = vld [vmem:[#allocation5 + $0x50] sm:$0xff]
    %v54 = vld [vmem:[#allocation5 + $0x58] sm:$0xff]
    %v67 = vunpack.c.l.b16 %v43
    %v68 = vunpack.c.h.b16 %v43
    %v69 = vunpack.c.l.b16 %v44
    %v70 = vunpack.c.h.b16 %v44
    %v71 = vunpack.c.l.b16 %v45
    %v72 = vunpack.c.h.b16 %v45
    %v73 = vunpack.c.l.b16 %v46
    %v74 = vunpack.c.h.b16 %v46
    %v75 = vunpack.c.l.b16 %v47
    %v76 = vunpack.c.h.b16 %v47
    %v77 = vunpack.c.l.b16 %v48
    %v78 = vunpack.c.h.b16 %v48
    %v79 = vunpack.c.l.b16 %v49
    %v80 = vunpack.c.h.b16 %v49
    %v81 = vunpack.c.l.b16 %v50
    %v82 = vunpack.c.h.b16 %v50
    %v83 = vunpack.c.l.b16 %v51
    %v84 = vunpack.c.h.b16 %v51
    %v85 = vunpack.c.l.b16 %v52
    %v86 = vunpack.c.h.b16 %v52
    %v87 = vunpack.c.l.b16 %v53
    %v88 = vunpack.c.h.b16 %v53
    %v89 = vunpack.c.l.b16 %v54
    %v90 = vunpack.c.h.b16 %v54
    %v91 = vpack.c.b16 %v71, %v67
    %v92 = vpack.c.b16 %v72, %v68
    %v93 = vpack.c.b16 %v73, %v69
    %v94 = vpack.c.b16 %v74, %v70
    %v95 = vpack.c.b16 %v79, %v75
    %v96 = vpack.c.b16 %v80, %v76
    %v97 = vpack.c.b16 %v81, %v77
    %v98 = vpack.c.b16 %v82, %v78
    %v99 = vpack.c.b16 %v87, %v83
    %v100 = vpack.c.b16 %v88, %v84
    %v101 = vpack.c.b16 %v89, %v85
    %v102 = vpack.c.b16 %v90, %v86
    %vm115 = vcmask 392192
    %v117 = vsel %vm115, %v42, 0
    %119 = vmatprep.subr.bf16.mxu0 %v92
    %120 = vmatpush1.bf16.msra.mxu0 %v91
    %121 = vmatprep.subr.bf16.mxu0 %v96
    %122 = vmatpush1.bf16.msra.mxu0 %v95
    %123 = vmatprep.subr.bf16.mxu0 %v100
    %124 = vmatpush1.bf16.msra.mxu0 %v99
    %125 = vmatprep.subr.bf16.mxu0 0
    %126 = vmatpush1.bf16.msra.mxu0 0
    %127 = vmatprep.subr.bf16.mxu0 0
    %128 = vmatpush1.bf16.msra.mxu0 0
    %129 = vmatprep.subr.bf16.mxu0 0
    %130 = vmatpush1.bf16.msra.mxu0 0
    %131 = vmatprep.subr.bf16.mxu0 0
    %132 = vmatpush1.bf16.msra.mxu0 0
    %133 = vmatprep.subr.bf16.mxu0 0
    %134 = vmatpush1.bf16.msra.mxu0 0
    %135 = vmatprep.subr.bf16.mxu0 0
    %136 = vmatpush1.bf16.msra.mxu0 0
    %137 = vmatprep.subr.bf16.mxu0 0
    %138 = vmatpush1.bf16.msra.mxu0 0
    %139 = vmatprep.subr.bf16.mxu0 0
    %140 = vmatpush1.bf16.msra.mxu0 0
    %141 = vmatprep.subr.bf16.mxu0 0
    %142 = vmatpush1.bf16.msra.mxu0 0
    %143 = vmatprep.subr.bf16.mxu0 0
    %144 = vmatpush1.bf16.msra.mxu0 0
    %145 = vmatprep.subr.bf16.mxu0 0
    %146 = vmatpush1.bf16.msra.mxu0 0
    %147 = vmatprep.subr.bf16.mxu0 0
    %148 = vmatpush1.bf16.msra.mxu0 0
    %149 = vmatprep.subr.bf16.mxu0 0
    %150 = vmatpush1.bf16.msra.mxu0 0
    %151 = vmatprep.mubr.bf16.mxu0 0
    %152 = vmatmul.mubr.bf16.gmra.mrb[0].mxu0 %v117
    %v153 = vpop.f32.mrb[0].mxu0
    %v154 = vadd.f32 0.0, %v153
    %v155 = vpop.f32.mrb[0].mxu0
    %v156 = vadd.f32 0.0, %v155
    %v157 = vpop.f32.mrb[0].mxu0
    %v158 = vpop.f32.mrb[0].mxu0
    %159 = vdwg.mxu0
    %160 = vmatprep.subr.bf16.mxu0 %v94
    %161 = vmatpush1.bf16.msra.mxu0 %v93
    %162 = vmatprep.subr.bf16.mxu0 %v98
    %163 = vmatpush1.bf16.msra.mxu0 %v97
    %164 = vmatprep.subr.bf16.mxu0 %v102
    %165 = vmatpush1.bf16.msra.mxu0 %v101
    %166 = vmatprep.subr.bf16.mxu0 0
    %167 = vmatpush1.bf16.msra.mxu0 0
    %168 = vmatprep.subr.bf16.mxu0 0
    %169 = vmatpush1.bf16.msra.mxu0 0
    %170 = vmatprep.subr.bf16.mxu0 0
    %171 = vmatpush1.bf16.msra.mxu0 0
    %172 = vmatprep.subr.bf16.mxu0 0
    %173 = vmatpush1.bf16.msra.mxu0 0
    %174 = vmatprep.subr.bf16.mxu0 0
    %175 = vmatpush1.bf16.msra.mxu0 0
    %176 = vmatprep.subr.bf16.mxu0 0
    %177 = vmatpush1.bf16.msra.mxu0 0
    %178 = vmatprep.subr.bf16.mxu0 0
    %179 = vmatpush1.bf16.msra.mxu0 0
    %180 = vmatprep.subr.bf16.mxu0 0
    %181 = vmatpush1.bf16.msra.mxu0 0
    %182 = vmatprep.subr.bf16.mxu0 0
    %183 = vmatpush1.bf16.msra.mxu0 0
    %184 = vmatprep.subr.bf16.mxu0 0
    %185 = vmatpush1.bf16.msra.mxu0 0
    %186 = vmatprep.subr.bf16.mxu0 0
    %187 = vmatpush1.bf16.msra.mxu0 0
    %188 = vmatprep.subr.bf16.mxu0 0
    %189 = vmatpush1.bf16.msra.mxu0 0
    %190 = vmatprep.subr.bf16.mxu0 0
    %191 = vmatpush1.bf16.msra.mxu0 0
    %192 = vmatprep.mubr.bf16.mxu0 0
    %193 = vmatmul.mubr.bf16.gmra.mrb[0].mxu0 %v117
    %v194 = vpop.f32.mrb[0].mxu0
    %v195 = vadd.f32 0.0, %v194
    %v196 = vpop.f32.mrb[0].mxu0
    %v197 = vadd.f32 0.0, %v196
    %v198 = vpop.f32.mrb[0].mxu0
    %v199 = vpop.f32.mrb[0].mxu0
    %200 = vdwg.mxu0
    %v201 = vpack.c.bf16 %v154, %v154
    %v202 = vpack.c.bf16 %v156, %v156
    %v203 = vpack.c.bf16 %v195, %v195
    %v204 = vpack.c.bf16 %v197, %v197
    %v209 = vunpack.c.l.b16 %v201
    %v210 = vunpack.c.l.b16 %v202
    %v211 = vunpack.c.l.b16 %v203
    %v212 = vunpack.c.l.b16 %v204
    %v213 = vpack.c.b16 %v210, %v209
    %v214 = vpack.c.b16 %v212, %v211
    %217 = vst [vmem:[#allocation7] sm:$0xff] %v213
    %218 = vst [vmem:[#allocation7 + $0x8] sm:$0xff] %v214
    %v219 = vadd.f32 %v154, %v156
    %v220 = vadd.f32 %v219, %v195
    %v221 = vadd.f32 %v220, %v197
    %222 = vadd.xlane.f32.xlu0 %v221
    %v223 = vpop.xlane.xlu0 %222
    %vm224 = vcmask 7168
    %225 = vst.msk [vmem:[%s3] sm:$0xff] %vm224, %v223
    %v226 = vmul.f32 %v154, %v154
    %v227 = vmul.f32 %v156, %v156
    %v228 = vmul.f32 %v195, %v195
    %v229 = vmul.f32 %v197, %v197
    %v230 = vadd.f32 %v226, %v227
    %v231 = vadd.f32 %v230, %v228
    %v232 = vadd.f32 %v231, %v229
    %233 = vadd.xlane.f32.xlu0 %v232
    %v234 = vpop.xlane.xlu0 %233
    %235 = vst.msk [vmem:[%s4] sm:$0xff] %vm224, %v234
    // Predicated region
    $region18: #{tpu_custom_call.1} parent=1 // pred_check
      _
    $region19: #{tpu_custom_call.1} parent=1 // pred_check_branch
      %237 = sbr.rel (0) target = $region21
    $region20: #{tpu_custom_call.1} parent=1 // pred_region
      %s239 = ssub.s32 256, 256
      %240 = vsyncadd [#allocation4], %s239
      %s242 = sshll.u32 [#allocation7], 4
      %s243 = int_to_ptr.vmem [resolvable:$true] %s242
      %245 = dma.vmem_to_hbm [thread:$0]  %s243, 256, %s2, [#allocation4]
    $region21: #{tpu_custom_call.1} parent=1 // pred_fallthru
      _
    // Predicated region
    $region22: #{tpu_custom_call.1} parent=1 // pred_check
      _
    $region23: #{tpu_custom_call.1} parent=1 // pred_check_branch
      %247 = sbr.rel (0) target = $region25
    $region24: #{tpu_custom_call.1} parent=1 // pred_region
      _
    $region25: #{tpu_custom_call.1} parent=1 // pred_fallthru
      _
    // Predicated region
    $region26: #{tpu_custom_call.1} parent=1 // pred_check
      _
    $region27: #{tpu_custom_call.1} parent=1 // pred_check_branch
      %249 = sbr.rel (0) target = $region29
    $region28: #{tpu_custom_call.1} parent=1 // pred_region
      _
    $region29: #{tpu_custom_call.1} parent=1 // pred_fallthru
      _
    // Predicated region
    $region30: #{tpu_custom_call.1} parent=1 // pred_check
      _
    $region31: #{tpu_custom_call.1} parent=1 // pred_check_branch
      %251 = sbr.rel (0) target = $region33
    $region32: #{tpu_custom_call.1} parent=1 // pred_region
      %252 = dma.done [#allocation4], 256
    $region33: #{tpu_custom_call.1} parent=1 // pred_fallthru
      _
    // Predicated region
    $region34: #{tpu_custom_call.1} parent=1 // pred_check
      _
    $region35: #{tpu_custom_call.1} parent=1 // pred_check_branch
      %254 = sbr.rel (0) target = $region37
    $region36: #{tpu_custom_call.1} parent=1 // pred_region
      _
    $region37: #{tpu_custom_call.1} parent=1 // pred_fallthru
      _
    // Predicated region
    $region38: #{tpu_custom_call.1} parent=1 // pred_check
      _
    $region39: #{tpu_custom_call.1} parent=1 // pred_check_branch
      %256 = sbr.rel (0) target = $region41
    $region40: #{tpu_custom_call.1} parent=1 // pred_region
      _
    $region41: #{tpu_custom_call.1} parent=1 // pred_fallthru
      _
    %257 = vsyncpa [#allocation3], 1
    %258 = vsyncpa [#allocation6], 1
    %259 = vsyncpa [#allocation4], 1

</llo_original>
